<compile_context>
chip_gen: v5e
topology: v5e:2x2
jax: 0.10.0
libtpu: 0.0.40
codegen_flags: <defaults>
</compile_context>

<pallas_src>
import functools

import numpy as np

import jax
import jax.numpy as jnp
from jax.experimental import pallas as pl
from jax.experimental.pallas import tpu as pltpu


def _conv_relu_kernel(x_ref, w_ref, b_ref, m_ref, o_ref, *, H, W, K, Cin, Cout, pad):
    # x_ref: (1, Cin, H*W)        one batch element, NCHW flattened (lane-dense)
    # w_ref: (Cout, K*K*Cin)      im2col-ordered weights (tap-major, channel-minor)
    # b_ref: (Cout, 1)            bias (lane-broadcast)
    # m_ref: (K*K, 1, H*W)        per-tap validity mask (1.0 inside image, 0.0 in halo)
    # o_ref: (1, Cout, H*W)       output, native NCHW flattened (lane-dense stores)
    HW = H * W
    x = x_ref[0]                                    # (Cin, HW)

    # Build the im2col matrix: for tap (kh, kw) the needed value at flat index
    # i = h*W + w is x[:, i + dh*W + dw] (dh=kh-pad, dw=kw-pad), zero outside
    # the image.  jnp.roll(x, -(dh*W+dw)) gives exactly that at every valid
    # position (no modulo wrap there); the precomputed mask zeroes the rest.
    # jnp.roll with a static shift lowers to two lane slices + concat, which is
    # negligible at (Cin, 256).
    cols = []
    for kh in range(K):
        for kw in range(K):
            dh, dw = kh - pad, kw - pad
            s = dh * W + dw
            shifted = x if s == 0 else jnp.roll(x, -s, axis=1)
            t = kh * K + kw
            cols.append(shifted * m_ref[t])         # (Cin, HW) * (1, HW)
    x_col = jnp.concatenate(cols, axis=0)           # (K*K*Cin, HW)

    # Single MXU matmul, contraction K*K*Cin, lane-dense (Cout, HW) result.
    acc = jnp.dot(w_ref[...], x_col, preferred_element_type=jnp.float32)
    acc = acc + b_ref[...]                          # bias, broadcast over lanes
    o_ref[0] = jnp.maximum(acc, 0.0).astype(o_ref.dtype)


def conv_relu(x_nchw, weight_oihw, bias):
    """Conv2d(padding=(K-1)//2) + ReLU.  x: (N, Cin, H, W) float32, NCHW in/out."""
    N, Cin, H, W = x_nchw.shape
    Cout, Cin_w, K, _ = weight_oihw.shape
    assert Cin == Cin_w
    pad = (K - 1) // 2
    HW = H * W

    # Free reshapes only -- no transpose / pad passes over the activation.
    x2d = x_nchw.reshape(N, Cin, HW)

    # (Cout, Cin, K, K) -> (Cout, K*K*Cin), tap-major / channel-minor to match
    # the im2col row order built in the kernel.  Tiny (Cout x K*K*Cin) tensor.
    w_mat = jnp.transpose(weight_oihw, (0, 2, 3, 1)).reshape(Cout, K * K * Cin)
    b2d = bias.reshape(Cout, 1)

    # Static per-tap validity masks, computed host-side with numpy (trace-time
    # constant); avoids any in-kernel iota / integer div-mod.
    hh, ww = np.meshgrid(np.arange(H), np.arange(W), indexing="ij")
    mask_rows = []
    for kh in range(K):
        for kw in range(K):
            dh, dw = kh - pad, kw - pad
            valid = ((hh + dh >= 0) & (hh + dh < H) &
                     (ww + dw >= 0) & (ww + dw < W))
            mask_rows.append(valid.reshape(1, HW))
    mask = jnp.asarray(
        np.concatenate(mask_rows, axis=0).astype(np.float32)
    ).reshape(K * K, 1, HW)

    kernel = functools.partial(
        _conv_relu_kernel, H=H, W=W, K=K, Cin=Cin, Cout=Cout, pad=pad
    )

    out = pl.pallas_call(
        kernel,
        out_shape=jax.ShapeDtypeStruct((N, Cout, HW), x_nchw.dtype),
        grid_spec=pltpu.PrefetchScalarGridSpec(
            num_scalar_prefetch=0,
            grid=(N,),
            in_specs=[
                pl.BlockSpec((1, Cin, HW), lambda n: (n, 0, 0)),
                pl.BlockSpec((Cout, K * K * Cin), lambda n: (0, 0)),
                pl.BlockSpec((Cout, 1), lambda n: (0, 0)),
                pl.BlockSpec((K * K, 1, HW), lambda n: (0, 0, 0)),
            ],
            out_specs=pl.BlockSpec((1, Cout, HW), lambda n: (n, 0, 0)),
        ),
        compiler_params=pltpu.CompilerParams(
            dimension_semantics=("parallel",),
        ),
    )(x2d, w_mat, b2d, mask)

    # Free reshape back to (N, Cout, H, W) -- output is already NCHW-ordered.
    return out.reshape(N, Cout, H, W)


if __name__ == "__main__":
    # Small shapes consistent with ConvReLU(inp=4, oup=8, kernel_size=3).
    N, Cin, H, W = 2, 4, 16, 16
    Cout, K = 8, 3

    key = jax.random.PRNGKey(0)
    kx, kw, kb = jax.random.split(key, 3)
    x = jax.random.normal(kx, (N, Cin, H, W), dtype=jnp.float32)
    weight = jax.random.normal(kw, (Cout, Cin, K, K), dtype=jnp.float32) * 0.1
    bias = jax.random.normal(kb, (Cout,), dtype=jnp.float32) * 0.1

    out = jax.block_until_ready(conv_relu(x, weight, bias))

    # Reference: XLA conv (NCHW / OIHW, same padding) + bias + ReLU.
    pad = (K - 1) // 2
    ref = jax.lax.conv_general_dilated(
        x, weight, window_strides=(1, 1),
        padding=[(pad, pad), (pad, pad)],
        dimension_numbers=("NCHW", "OIHW", "NCHW"),
    ) + bias.reshape(1, Cout, 1, 1)
    ref = jnp.maximum(ref, 0.0)

    assert out.shape == (N, Cout, H, W)
    assert jnp.allclose(out, ref, atol=1e-4, rtol=1e-4), float(
        jnp.max(jnp.abs(out - ref)))
    print("KERNEL_OK")
</pallas_src>

<mosaic_0001>
module attributes {stable_mosaic.version = 11 : i64} {
  func.func @_conv_relu_kernel(%arg0: i32, %arg1: memref<1x4x256xf32, #tpu.memory_space<vmem>>, %arg2: memref<8x36xf32, #tpu.memory_space<vmem>>, %arg3: memref<8x1xf32, #tpu.memory_space<vmem>>, %arg4: memref<9x1x256xf32, #tpu.memory_space<vmem>>, %arg5: memref<1x8x256xf32, #tpu.memory_space<vmem>>) attributes {dimension_semantics = [#tpu.dimension_semantics<parallel>], iteration_bounds = array<i64: 2>, scalar_prefetch = 0 : i64, scratch_operands = 0 : i64, tpu.core_type = #tpu.core_type<tc>, window_params = [{transform_indices = @transform_0, window_bounds = array<i64: 1, 4, 256>}, {pipeline_mode = #tpu.pipeline_mode<synchronous>, transform_indices = @transform_1, window_bounds = array<i64: 8, 36>}, {pipeline_mode = #tpu.pipeline_mode<synchronous>, transform_indices = @transform_2, window_bounds = array<i64: 8, 1>}, {pipeline_mode = #tpu.pipeline_mode<synchronous>, transform_indices = @transform_3, window_bounds = array<i64: 9, 1, 256>}, {transform_indices = @transform_4, window_bounds = array<i64: 1, 8, 256>}]} {
    %c0 = arith.constant 0 : index
    %c0_0 = arith.constant 0 : index
    %c0_1 = arith.constant 0 : index
    %0 = vector.load %arg1[%c0, %c0_0, %c0_1] : memref<1x4x256xf32, #tpu.memory_space<vmem>>, vector<1x4x256xf32>
    %1 = vector.shape_cast %0 : vector<1x4x256xf32> to vector<4x256xf32>
    %2 = vector.extract_strided_slice %1 {offsets = [0, 239], sizes = [4, 17], strides = [1, 1]} : vector<4x256xf32> to vector<4x17xf32>
    %3 = vector.extract_strided_slice %1 {offsets = [0, 0], sizes = [4, 239], strides = [1, 1]} : vector<4x256xf32> to vector<4x239xf32>
    %4 = tpu.concatenate %2, %3 in 1 : vector<4x17xf32>, vector<4x239xf32> -> vector<4x256xf32>
    %c0_2 = arith.constant 0 : index
    %c0_3 = arith.constant 0 : index
    %c0_4 = arith.constant 0 : index
    %5 = vector.load %arg4[%c0_2, %c0_3, %c0_4] : memref<9x1x256xf32, #tpu.memory_space<vmem>>, vector<1x1x256xf32>
    %6 = vector.shape_cast %5 : vector<1x1x256xf32> to vector<1x256xf32>
    %7 = vector.broadcast %6 : vector<1x256xf32> to vector<4x256xf32>
    %8 = arith.mulf %4, %7 : vector<4x256xf32>
    %9 = vector.extract_strided_slice %1 {offsets = [0, 240], sizes = [4, 16], strides = [1, 1]} : vector<4x256xf32> to vector<4x16xf32>
    %10 = vector.extract_strided_slice %1 {offsets = [0, 0], sizes = [4, 240], strides = [1, 1]} : vector<4x256xf32> to vector<4x240xf32>
    %11 = tpu.concatenate %9, %10 in 1 : vector<4x16xf32>, vector<4x240xf32> -> vector<4x256xf32>
    %c1 = arith.constant 1 : index
    %c0_5 = arith.constant 0 : index
    %c0_6 = arith.constant 0 : index
    %12 = vector.load %arg4[%c1, %c0_5, %c0_6] : memref<9x1x256xf32, #tpu.memory_space<vmem>>, vector<1x1x256xf32>
    %13 = vector.shape_cast %12 : vector<1x1x256xf32> to vector<1x256xf32>
    %14 = vector.broadcast %13 : vector<1x256xf32> to vector<4x256xf32>
    %15 = arith.mulf %11, %14 : vector<4x256xf32>
    %16 = vector.extract_strided_slice %1 {offsets = [0, 241], sizes = [4, 15], strides = [1, 1]} : vector<4x256xf32> to vector<4x15xf32>
    %17 = vector.extract_strided_slice %1 {offsets = [0, 0], sizes = [4, 241], strides = [1, 1]} : vector<4x256xf32> to vector<4x241xf32>
    %18 = tpu.concatenate %16, %17 in 1 : vector<4x15xf32>, vector<4x241xf32> -> vector<4x256xf32>
    %c2 = arith.constant 2 : index
    %c0_7 = arith.constant 0 : index
    %c0_8 = arith.constant 0 : index
    %19 = vector.load %arg4[%c2, %c0_7, %c0_8] : memref<9x1x256xf32, #tpu.memory_space<vmem>>, vector<1x1x256xf32>
    %20 = vector.shape_cast %19 : vector<1x1x256xf32> to vector<1x256xf32>
    %21 = vector.broadcast %20 : vector<1x256xf32> to vector<4x256xf32>
    %22 = arith.mulf %18, %21 : vector<4x256xf32>
    %23 = vector.extract_strided_slice %1 {offsets = [0, 255], sizes = [4, 1], strides = [1, 1]} : vector<4x256xf32> to vector<4x1xf32>
    %24 = vector.extract_strided_slice %1 {offsets = [0, 0], sizes = [4, 255], strides = [1, 1]} : vector<4x256xf32> to vector<4x255xf32>
    %25 = tpu.concatenate %23, %24 in 1 : vector<4x1xf32>, vector<4x255xf32> -> vector<4x256xf32>
    %c3 = arith.constant 3 : index
    %c0_9 = arith.constant 0 : index
    %c0_10 = arith.constant 0 : index
    %26 = vector.load %arg4[%c3, %c0_9, %c0_10] : memref<9x1x256xf32, #tpu.memory_space<vmem>>, vector<1x1x256xf32>
    %27 = vector.shape_cast %26 : vector<1x1x256xf32> to vector<1x256xf32>
    %28 = vector.broadcast %27 : vector<1x256xf32> to vector<4x256xf32>
    %29 = arith.mulf %25, %28 : vector<4x256xf32>
    %c4 = arith.constant 4 : index
    %c0_11 = arith.constant 0 : index
    %c0_12 = arith.constant 0 : index
    %30 = vector.load %arg4[%c4, %c0_11, %c0_12] : memref<9x1x256xf32, #tpu.memory_space<vmem>>, vector<1x1x256xf32>
    %31 = vector.shape_cast %30 : vector<1x1x256xf32> to vector<1x256xf32>
    %32 = vector.broadcast %31 : vector<1x256xf32> to vector<4x256xf32>
    %33 = arith.mulf %1, %32 : vector<4x256xf32>
    %34 = vector.extract_strided_slice %1 {offsets = [0, 1], sizes = [4, 255], strides = [1, 1]} : vector<4x256xf32> to vector<4x255xf32>
    %35 = vector.extract_strided_slice %1 {offsets = [0, 0], sizes = [4, 1], strides = [1, 1]} : vector<4x256xf32> to vector<4x1xf32>
    %36 = tpu.concatenate %34, %35 in 1 : vector<4x255xf32>, vector<4x1xf32> -> vector<4x256xf32>
    %c5 = arith.constant 5 : index
    %c0_13 = arith.constant 0 : index
    %c0_14 = arith.constant 0 : index
    %37 = vector.load %arg4[%c5, %c0_13, %c0_14] : memref<9x1x256xf32, #tpu.memory_space<vmem>>, vector<1x1x256xf32>
    %38 = vector.shape_cast %37 : vector<1x1x256xf32> to vector<1x256xf32>
    %39 = vector.broadcast %38 : vector<1x256xf32> to vector<4x256xf32>
    %40 = arith.mulf %36, %39 : vector<4x256xf32>
    %41 = vector.extract_strided_slice %1 {offsets = [0, 15], sizes = [4, 241], strides = [1, 1]} : vector<4x256xf32> to vector<4x241xf32>
    %42 = vector.extract_strided_slice %1 {offsets = [0, 0], sizes = [4, 15], strides = [1, 1]} : vector<4x256xf32> to vector<4x15xf32>
    %43 = tpu.concatenate %41, %42 in 1 : vector<4x241xf32>, vector<4x15xf32> -> vector<4x256xf32>
    %c6 = arith.constant 6 : index
    %c0_15 = arith.constant 0 : index
    %c0_16 = arith.constant 0 : index
    %44 = vector.load %arg4[%c6, %c0_15, %c0_16] : memref<9x1x256xf32, #tpu.memory_space<vmem>>, vector<1x1x256xf32>
    %45 = vector.shape_cast %44 : vector<1x1x256xf32> to vector<1x256xf32>
    %46 = vector.broadcast %45 : vector<1x256xf32> to vector<4x256xf32>
    %47 = arith.mulf %43, %46 : vector<4x256xf32>
    %48 = vector.extract_strided_slice %1 {offsets = [0, 16], sizes = [4, 240], strides = [1, 1]} : vector<4x256xf32> to vector<4x240xf32>
    %49 = vector.extract_strided_slice %1 {offsets = [0, 0], sizes = [4, 16], strides = [1, 1]} : vector<4x256xf32> to vector<4x16xf32>
    %50 = tpu.concatenate %48, %49 in 1 : vector<4x240xf32>, vector<4x16xf32> -> vector<4x256xf32>
    %c7 = arith.constant 7 : index
    %c0_17 = arith.constant 0 : index
    %c0_18 = arith.constant 0 : index
    %51 = vector.load %arg4[%c7, %c0_17, %c0_18] : memref<9x1x256xf32, #tpu.memory_space<vmem>>, vector<1x1x256xf32>
    %52 = vector.shape_cast %51 : vector<1x1x256xf32> to vector<1x256xf32>
    %53 = vector.broadcast %52 : vector<1x256xf32> to vector<4x256xf32>
    %54 = arith.mulf %50, %53 : vector<4x256xf32>
    %55 = vector.extract_strided_slice %1 {offsets = [0, 17], sizes = [4, 239], strides = [1, 1]} : vector<4x256xf32> to vector<4x239xf32>
    %56 = vector.extract_strided_slice %1 {offsets = [0, 0], sizes = [4, 17], strides = [1, 1]} : vector<4x256xf32> to vector<4x17xf32>
    %57 = tpu.concatenate %55, %56 in 1 : vector<4x239xf32>, vector<4x17xf32> -> vector<4x256xf32>
    %c8 = arith.constant 8 : index
    %c0_19 = arith.constant 0 : index
    %c0_20 = arith.constant 0 : index
    %58 = vector.load %arg4[%c8, %c0_19, %c0_20] : memref<9x1x256xf32, #tpu.memory_space<vmem>>, vector<1x1x256xf32>
    %59 = vector.shape_cast %58 : vector<1x1x256xf32> to vector<1x256xf32>
    %60 = vector.broadcast %59 : vector<1x256xf32> to vector<4x256xf32>
    %61 = arith.mulf %57, %60 : vector<4x256xf32>
    %62 = tpu.concatenate %8, %15, %22, %29, %33, %40, %47, %54, %61 in 0 : vector<4x256xf32>, vector<4x256xf32>, vector<4x256xf32>, vector<4x256xf32>, vector<4x256xf32>, vector<4x256xf32>, vector<4x256xf32>, vector<4x256xf32>, vector<4x256xf32> -> vector<36x256xf32>
    %c0_21 = arith.constant 0 : index
    %c0_22 = arith.constant 0 : index
    %63 = vector.load %arg2[%c0_21, %c0_22] : memref<8x36xf32, #tpu.memory_space<vmem>>, vector<8x36xf32>
    %cst = arith.constant dense<0.000000e+00> : vector<8x256xf32>
    %64 = tpu.matmul %63, %62, %cst {dimension_numbers = #tpu.dot_dimension_numbers<[1], [0], [0], [1], [0, 0, 1, 1], [], []>} : vector<8x36xf32>, vector<36x256xf32>, vector<8x256xf32> -> vector<8x256xf32>
    %c0_23 = arith.constant 0 : index
    %c0_24 = arith.constant 0 : index
    %65 = vector.load %arg3[%c0_23, %c0_24] : memref<8x1xf32, #tpu.memory_space<vmem>>, vector<8x1xf32>
    %66 = vector.broadcast %65 : vector<8x1xf32> to vector<8x256xf32>
    %67 = arith.addf %64, %66 : vector<8x256xf32>
    %cst_25 = arith.constant 0.000000e+00 : f32
    %68 = vector.broadcast %cst_25 : f32 to vector<8x256xf32>
    %69 = arith.maximumf %67, %68 : vector<8x256xf32>
    %c0_26 = arith.constant 0 : index
    %c0_27 = arith.constant 0 : index
    %c0_28 = arith.constant 0 : index
    %70 = vector.load %arg5[%c0_26, %c0_27, %c0_28] : memref<1x8x256xf32, #tpu.memory_space<vmem>>, vector<1x8x256xf32>
    %71 = vector.shape_cast %70 : vector<1x8x256xf32> to vector<8x256xf32>
    %72 = vector.shape_cast %69 : vector<8x256xf32> to vector<1x8x256xf32>
    tpu.vector_store %arg5[%c0_26, %c0_27, %c0_28], %72 {strides = array<i32>} : memref<1x8x256xf32, #tpu.memory_space<vmem>>, vector<1x8x256xf32>,
    return
  }
  func.func @transform_0(%arg0: i32) -> (i32, i32, i32) {
    %c0_i32 = arith.constant 0 : i32
    %c0_i32_0 = arith.constant 0 : i32
    %c0_i32_1 = arith.constant 0 : i32
    return %arg0, %c0_i32, %c0_i32_0 : i32, i32, i32
  }
  func.func @transform_1(%arg0: i32) -> (i32, i32) {
    %c0_i32 = arith.constant 0 : i32
    %c0_i32_0 = arith.constant 0 : i32
    %c0_i32_1 = arith.constant 0 : i32
    return %c0_i32, %c0_i32_0 : i32, i32
  }
  func.func @transform_2(%arg0: i32) -> (i32, i32) {
    %c0_i32 = arith.constant 0 : i32
    %c0_i32_0 = arith.constant 0 : i32
    %c0_i32_1 = arith.constant 0 : i32
    return %c0_i32, %c0_i32_0 : i32, i32
  }
  func.func @transform_3(%arg0: i32) -> (i32, i32, i32) {
    %c0_i32 = arith.constant 0 : i32
    %c0_i32_0 = arith.constant 0 : i32
    %c0_i32_1 = arith.constant 0 : i32
    %c0_i32_2 = arith.constant 0 : i32
    return %c0_i32, %c0_i32_0, %c0_i32_1 : i32, i32, i32
  }
  func.func @transform_4(%arg0: i32) -> (i32, i32, i32) {
    %c0_i32 = arith.constant 0 : i32
    %c0_i32_0 = arith.constant 0 : i32
    %c0_i32_1 = arith.constant 0 : i32
    return %arg0, %c0_i32, %c0_i32_0 : i32, i32, i32
  }
}

</mosaic_0001>

<llo_original>
// kernel: tpu_custom_call.1
$region0: #{tpu_custom_call.1}
  #allocation0 [shape = 'u32[]', space=smem, size = 0x4, offset = 0x4, fixed_abs, tag = 'smem constant byte address 0x4 - core index']
  #allocation1 [shape = 'u32[72,128]{1,0:T(1,128)}', space=vmem, size = 0x9000, scoped, tag = 'internal scratch']
  %s0 = inlined_call_operand.hbm [shape: f32[2,4,256], index: 0, kind: input, shape index: {}]
  %s1 = inlined_call_operand.vmem [shape: f32[8,36], index: 1, kind: input, shape index: {}]
  %s2 = inlined_call_operand.vmem [shape: f32[8,1], index: 2, kind: input, shape index: {}]
  %s3 = inlined_call_operand.hbm [shape: f32[9,1,256], index: 3, kind: input, shape index: {}]
  %s4 = inlined_call_operand.hbm [shape: f32[2,8,256], index: 4, kind: output, shape index: {}]
  %s5 = sld [smem:[#allocation0]]
  $region57: #{tpu_custom_call.1} parent=0
    _
  %s7 = ssub.s32 1, %s5
  %s8 = scalar_select 0, %s7, %s5
  $region1: #{tpu_custom_call.1} parent=0
    #allocation2 [shape = 'u8[8192]{0}', space=vmem, size = 0x2000, scoped, tag = 'input window, operand 0']
    #allocation3 [shape = 's32[2]{0}', space=sflag, size = 0x8, scoped, tag = 'scoped memory for tpu_custom_call.1']
    #allocation4 [shape = 's32[2]{0}', space=sflag, size = 0x8, scoped, tag = 'scoped memory for tpu_custom_call.1']
    #allocation5 [shape = 'u8[9216]{0}', space=vmem, size = 0x2400, scoped, tag = 'input window, operand 3, single buffered']
    #allocation6 [shape = 's32[1]{0}', space=sflag, size = 0x4, scoped, tag = 'scoped memory for tpu_custom_call.1']
    #allocation7 [shape = 'u8[16384]{0}', space=vmem, size = 0x4000, scoped, tag = 'output window, operand 0']
    %9 = vsyncpa [#allocation3], 0
    %s10 = scalar_lea.sflag [#allocation3], 1
    %11 = vsyncpa %s10, 0
    %12 = vsyncpa [#allocation6], 0
    %13 = vsyncpa [#allocation4], 0
    %s14 = scalar_lea.sflag [#allocation4], 1
    %15 = vsyncpa %s14, 0
    loop: start=0, step=1, limit=4
    $region2: #{tpu_custom_call.1} parent=1 // loop_pre_header
      _
    $region3: #{tpu_custom_call.1} parent=1 // loop_header
      %s17 = sphi 0, %s21
      %p18 = scmp.ge.s32.totalorder %s17, 4
      %s27 = sphi 0, %s29
      %s30 = sphi 0, %s27
      %s31 = sphi 0, %s30
      %s47 = sphi 0, %s31
      %s51 = sphi 0, %s51
      %s53 = sphi 0, %s51
      %s54 = sphi 0, %s53
      %s68 = sphi 0, %s54
      %s72 = sphi 0, %s72
      %s74 = sphi 0, %s72
      %s75 = sphi 0, %s74
      %s89 = sphi 0, %s75
      %s93 = sphi 0, %s93
      %s95 = sphi 0, %s93
      %s96 = sphi 0, %s95
      %s110 = sphi 0, %s96
      %s116 = sphi 0, %s118
      %s119 = sphi 0, %s116
      %s120 = sphi 0, %s119
      %s136 = sphi 0, %s120
    $region4: #{tpu_custom_call.1} parent=1 // loop_header_branch
      %20 = sbr.rel (%p18) target = $region8
    $region5: #{tpu_custom_call.1} parent=1 // loop_body
      %s22 = ssub.s32 %s17, 1
      %s23 = ssub.s32 %s17, 2
      %s24 = sadd.s32 %s17, 1
      %s25 = ssub.s32 %s17, %s24
      %p26 = scmp.eq.s32.totalorder %s25, 0
      %s28 = sadd.s32 %s27, 1
      %s29 = scalar_select %p26, %s27, %s28
      %p32 = pneg %p26
      %p33 = scmp.eq.s32.totalorder %s17, 1
      %p34 = por %p32, %p33
      %p35 = scmp.ne.s32.totalorder %s27, %s30
      %p36 = scmp.eq.s32.totalorder %s17, 0
      %p37 = por %p35, %p36
      %p38 = scmp.ne.s32.totalorder %s27, %s30
      %p39 = scmp.eq.s32.totalorder %s22, 1
      %p40 = por %p38, %p39
      %p41 = scmp.ne.s32.totalorder %s30, %s31
      %p42 = scmp.eq.s32.totalorder %s22, 0
      %p43 = por %p41, %p42
      %p44 = scmp.ne.s32.totalorder %s30, %s31
      %p45 = scmp.eq.s32.totalorder %s23, 1
      %p46 = por %p44, %p45
      %p48 = scmp.ne.s32.totalorder %s31, %s47
      %p49 = scmp.eq.s32.totalorder %s23, 0
      %p50 = por %p48, %p49
      %s52 = sadd.s32 %s51, 1
      %p55 = scmp.eq.s32.totalorder %s17, 1
      %p56 = scmp.ne.s32.totalorder %s51, %s53
      %p57 = scmp.eq.s32.totalorder %s17, 0
      %p58 = por %p56, %p57
      %p59 = scmp.ne.s32.totalorder %s51, %s53
      %p60 = scmp.eq.s32.totalorder %s22, 1
      %p61 = por %p59, %p60
      %p62 = scmp.ne.s32.totalorder %s53, %s54
      %p63 = scmp.eq.s32.totalorder %s22, 0
      %p64 = por %p62, %p63
      %p65 = scmp.ne.s32.totalorder %s53, %s54
      %p66 = scmp.eq.s32.totalorder %s23, 1
      %p67 = por %p65, %p66
      %p69 = scmp.ne.s32.totalorder %s54, %s68
      %p70 = scmp.eq.s32.totalorder %s23, 0
      %p71 = por %p69, %p70
      %s73 = sadd.s32 %s72, 1
      %p76 = scmp.eq.s32.totalorder %s17, 1
      %p77 = scmp.ne.s32.totalorder %s72, %s74
      %p78 = scmp.eq.s32.totalorder %s17, 0
      %p79 = por %p77, %p78
      %p80 = scmp.ne.s32.totalorder %s72, %s74
      %p81 = scmp.eq.s32.totalorder %s22, 1
      %p82 = por %p80, %p81
      %p83 = scmp.ne.s32.totalorder %s74, %s75
      %p84 = scmp.eq.s32.totalorder %s22, 0
      %p85 = por %p83, %p84
      %p86 = scmp.ne.s32.totalorder %s74, %s75
      %p87 = scmp.eq.s32.totalorder %s23, 1
      %p88 = por %p86, %p87
      %p90 = scmp.ne.s32.totalorder %s75, %s89
      %p91 = scmp.eq.s32.totalorder %s23, 0
      %p92 = por %p90, %p91
      %s94 = sadd.s32 %s93, 1
      %p97 = scmp.eq.s32.totalorder %s17, 1
      %p98 = scmp.ne.s32.totalorder %s93, %s95
      %p99 = scmp.eq.s32.totalorder %s17, 0
      %p100 = por %p98, %p99
      %p101 = scmp.ne.s32.totalorder %s93, %s95
      %p102 = scmp.eq.s32.totalorder %s22, 1
      %p103 = por %p101, %p102
      %p104 = scmp.ne.s32.totalorder %s95, %s96
      %p105 = scmp.eq.s32.totalorder %s22, 0
      %p106 = por %p104, %p105
      %p107 = scmp.ne.s32.totalorder %s95, %s96
      %p108 = scmp.eq.s32.totalorder %s23, 1
      %p109 = por %p107, %p108
      %p111 = scmp.ne.s32.totalorder %s96, %s110
      %p112 = scmp.eq.s32.totalorder %s23, 0
      %p113 = por %p111, %p112
      %s114 = ssub.s32 %s17, %s24
      %p115 = scmp.eq.s32.totalorder %s114, 0
      %s117 = sadd.s32 %s116, 1
      %s118 = scalar_select %p115, %s116, %s117
      %p121 = pneg %p115
      %p122 = scmp.eq.s32.totalorder %s17, 1
      %p123 = por %p121, %p122
      %p124 = scmp.ne.s32.totalorder %s116, %s119
      %p125 = scmp.eq.s32.totalorder %s17, 0
      %p126 = por %p124, %p125
      %p127 = scmp.ne.s32.totalorder %s116, %s119
      %p128 = scmp.eq.s32.totalorder %s22, 1
      %p129 = por %p127, %p128
      %p130 = scmp.ne.s32.totalorder %s119, %s120
      %p131 = scmp.eq.s32.totalorder %s22, 0
      %p132 = por %p130, %p131
      %p133 = scmp.ne.s32.totalorder %s119, %s120
      %p134 = scmp.eq.s32.totalorder %s23, 1
      %p135 = por %p133, %p134
      %p137 = scmp.ne.s32.totalorder %s120, %s136
      %p138 = scmp.eq.s32.totalorder %s23, 0
      %p139 = por %p137, %p138
      %p140 = scmp.le.s32.totalorder 1, %s17
      %p141 = scmp.lt.s32.totalorder %s17, 3
      %p142 = pnand %p140, %p141
      %p143 = pneg %p142
      // Predicated region
      $region9: #{tpu_custom_call.1} parent=5 // pred_check
        _
      $region10: #{tpu_custom_call.1} parent=5 // pred_check_branch
        %145 = sbr.rel (%p142) target = $region12
      $region11: #{tpu_custom_call.1} parent=5 // pred_region
        %s146 = ssub.s32 %s17, 1
        // Predicated region
        $region13: #{tpu_custom_call.1} parent=11 // pred_check
          %p147 = pneg %p64
        $region14: #{tpu_custom_call.1} parent=11 // pred_check_branch
          %149 = sbr.rel (%p147) target = $region16
        $region15: #{tpu_custom_call.1} parent=11 // pred_region
          _
        $region16: #{tpu_custom_call.1} parent=11 // pred_fallthru
          _
        // Predicated region
        $region17: #{tpu_custom_call.1} parent=11 // pred_check
          %p150 = pneg %p85
        $region18: #{tpu_custom_call.1} parent=11 // pred_check_branch
          %152 = sbr.rel (%p150) target = $region20
        $region19: #{tpu_custom_call.1} parent=11 // pred_region
          _
        $region20: #{tpu_custom_call.1} parent=11 // pred_fallthru
          _
        // Predicated region
        $region21: #{tpu_custom_call.1} parent=11 // pred_check
          %p153 = pneg %p106
        $region22: #{tpu_custom_call.1} parent=11 // pred_check_branch
          %155 = sbr.rel (%p153) target = $region24
        $region23: #{tpu_custom_call.1} parent=11 // pred_region
          %157 = vsyncadd [#allocation6], 0
          %s158 = sshll.u32 %s3, 4
          %s159 = int_to_ptr.hbm [resolvable:$true] %s158
          %s160 = sshll.u32 [#allocation5], 4
          %s161 = int_to_ptr.vmem [resolvable:$true] %s160
          %166 = dma.hbm_to_vmem [thread:$0]  %s159, 288, %s161, [#allocation6], 32, 32, 2
        $region24: #{tpu_custom_call.1} parent=11 // pred_fallthru
          _
      $region12: #{tpu_custom_call.1} parent=5 // pred_fallthru
        _
      %p167 = scmp.lt.s32.totalorder %s17, 2
      // Predicated region
      $region25: #{tpu_custom_call.1} parent=5 // pred_check
        %p168 = pneg %p167
      $region26: #{tpu_custom_call.1} parent=5 // pred_check_branch
        %170 = sbr.rel (%p168) target = $region28
      $region27: #{tpu_custom_call.1} parent=5 // pred_region
        // Predicated region
        $region29: #{tpu_custom_call.1} parent=27 // pred_check
          %p171 = pneg %p37
        $region30: #{tpu_custom_call.1} parent=27 // pred_check_branch
          %173 = sbr.rel (%p171) target = $region32
        $region31: #{tpu_custom_call.1} parent=27 // pred_region
          %s174 = sand.u32 %s27, 1
          %s175 = scalar_lea.sflag [#allocation3], %s174
          %s176 = sand.u32 %s27, 1
          %s177 = smul.addr %s176, 8
          %s178 = scalar_lea.vmem [#allocation2], %s177
          %180 = vsyncadd %s175, 0
          %s181 = smul.addr %s17, 2
          %s182 = smul.addr %s181, 4
          %s183 = scalar_lea.hbm %s0, %s182
          %s185 = sshll.u32 %s183, 4
          %s186 = int_to_ptr.hbm [resolvable:$true] %s185
          %s187 = sshll.u32 %s178, 4
          %s188 = int_to_ptr.vmem [resolvable:$true] %s187
          %190 = dma.hbm_to_vmem [thread:$0]  %s186, 128, %s188, %s175
        $region32: #{tpu_custom_call.1} parent=27 // pred_fallthru
          _
      $region28: #{tpu_custom_call.1} parent=5 // pred_fallthru
        _
      %p191 = scmp.le.s32.totalorder 1, %s17
      %p192 = scmp.lt.s32.totalorder %s17, 3
      %p193 = pnand %p191, %p192
      %p194 = pneg %p193
      // Predicated region
      $region33: #{tpu_custom_call.1} parent=5 // pred_check
        _
      $region34: #{tpu_custom_call.1} parent=5 // pred_check_branch
        %196 = sbr.rel (%p193) target = $region36
      $region35: #{tpu_custom_call.1} parent=5 // pred_region
        %s197 = ssub.s32 %s17, 1
        %s198 = sand.u32 %s30, 1
        %s199 = scalar_lea.sflag [#allocation3], %s198
        %s200 = sand.u32 %s30, 1
        %s201 = smul.addr %s200, 8
        %s202 = scalar_lea.vmem [#allocation2], %s201
        // Predicated region
        $region37: #{tpu_custom_call.1} parent=35 // pred_check
          %p203 = pneg %p43
        $region38: #{tpu_custom_call.1} parent=35 // pred_check_branch
          %205 = sbr.rel (%p203) target = $region40
        $region39: #{tpu_custom_call.1} parent=35 // pred_region
          %207 = dma.done %s199, 128
        $region40: #{tpu_custom_call.1} parent=35 // pred_fallthru
          _
        // Predicated region
        $region41: #{tpu_custom_call.1} parent=35 // pred_check
          %p208 = pneg %p106
        $region42: #{tpu_custom_call.1} parent=35 // pred_check_branch
          %210 = sbr.rel (%p208) target = $region44
        $region43: #{tpu_custom_call.1} parent=35 // pred_region
          %212 = dma.done [#allocation6], 288
        $region44: #{tpu_custom_call.1} parent=35 // pred_fallthru
          _
        %s213 = sand.u32 %s30, 1
        %s214 = scalar_lea.sflag [#allocation3], %s213
        %s215 = sand.u32 %s30, 1
        %s216 = smul.addr %s215, 8
        %s217 = scalar_lea.vmem [#allocation2], %s216
        %p218 = pneg %p43
        %p219 = pneg %p40
        %p220 = pneg %p64
        %p221 = pneg %p61
        %p222 = pneg %p85
        %p223 = pneg %p82
        %p224 = pneg %p106
        %p225 = pneg %p103
        %p226 = pneg %p132
        %p227 = pneg %p129
        %s228 = sand.u32 %s119, 1
        %s229 = scalar_lea.sflag [#allocation4], %s228
        %s230 = sand.u32 %s119, 1
        %s231 = smul.addr %s230, 16
        %s232 = scalar_lea.vmem [#allocation7], %s231
        %v233 = vld [vmem:[%s202] sm:$0xff]
        %235 = vst [vmem:[#allocation1] ss:$2 sm:$0xff] %v233
        %v236 = vld.sshfl [vmem:[#allocation1 + $0x8] sm:$0xff pattern:$0x75316420]
        %237 = vrot.lane.b32.xlu0 %v236, 17
        %v238 = vpop.permute.xlu0 %237
        %240 = vst [vmem:[#allocation1] ss:$2 sm:$0xff] %v233
        %v241 = vld.sshfl [vmem:[#allocation1] sm:$0xff pattern:$0x75316420]
        %v242 = vld.sshfl [vmem:[#allocation1 + $0x8] sm:$0xff pattern:$0x75316420]
        %243 = vrot.lane.b32.xlu0 %v241, 17
        %v244 = vpop.permute.xlu0 %243
        %245 = vrot.lane.b32.xlu0 %v242, 17
        %v246 = vpop.permute.xlu0 %245
        %vm247 = vcmask 138240
        %v248 = vsel %vm247, %v244, %v246
        %v251 = vsel %vm247, %v238, %v244
        %v252 = vld [vmem:[#allocation5] sm:$0x3]
        %v254 = vperm.slane %v252, 0
        %v255 = vperm.slane %v252, 1
        %v258 = vmul.f32 %v251, %v254
        %v259 = vmul.f32 %v248, %v255
        %260 = vst [vmem:[#allocation1] ss:$2 sm:$0xff] %v233
        %v261 = vld.sshfl [vmem:[#allocation1 + $0x8] sm:$0xff pattern:$0x75316420]
        %262 = vrot.lane.b32.xlu0 %v261, 16
        %v263 = vpop.permute.xlu0 %262
        %265 = vst [vmem:[#allocation1] ss:$2 sm:$0xff] %v233
        %v266 = vld.sshfl [vmem:[#allocation1] sm:$0xff pattern:$0x75316420]
        %v267 = vld.sshfl [vmem:[#allocation1 + $0x8] sm:$0xff pattern:$0x75316420]
        %268 = vrot.lane.b32.xlu0 %v266, 16
        %v269 = vpop.permute.xlu0 %268
        %270 = vrot.lane.b32.xlu0 %v267, 16
        %v271 = vpop.permute.xlu0 %270
        %vm272 = vcmask 130048
        %v273 = vsel %vm272, %v269, %v271
        %v276 = vsel %vm272, %v263, %v269
        %s277 = scalar_lea.vmem [#allocation5], 2
        %v278 = vld [vmem:[%s277] sm:$0x3]
        %v280 = vperm.slane %v278, 0
        %v281 = vperm.slane %v278, 1
        %v284 = vmul.f32 %v276, %v280
        %v285 = vmul.f32 %v273, %v281
        %286 = vst [vmem:[#allocation1] ss:$2 sm:$0xff] %v233
        %v287 = vld.sshfl [vmem:[#allocation1 + $0x8] sm:$0xff pattern:$0x75316420]
        %288 = vrot.lane.b32.xlu0 %v287, 15
        %v289 = vpop.permute.xlu0 %288
        %291 = vst [vmem:[#allocation1] ss:$2 sm:$0xff] %v233
        %v292 = vld.sshfl [vmem:[#allocation1] sm:$0xff pattern:$0x75316420]
        %v293 = vld.sshfl [vmem:[#allocation1 + $0x8] sm:$0xff pattern:$0x75316420]
        %294 = vrot.lane.b32.xlu0 %v292, 15
        %v295 = vpop.permute.xlu0 %294
        %296 = vrot.lane.b32.xlu0 %v293, 15
        %v297 = vpop.permute.xlu0 %296
        %vm298 = vcmask 121856
        %v299 = vsel %vm298, %v295, %v297
        %v302 = vsel %vm298, %v289, %v295
        %s303 = scalar_lea.vmem [#allocation5], 4
        %v304 = vld [vmem:[%s303] sm:$0x3]
        %v306 = vperm.slane %v304, 0
        %v307 = vperm.slane %v304, 1
        %v310 = vmul.f32 %v302, %v306
        %v311 = vmul.f32 %v299, %v307
        %312 = vst [vmem:[#allocation1] ss:$2 sm:$0xff] %v233
        %v313 = vld.sshfl [vmem:[#allocation1 + $0x8] sm:$0xff pattern:$0x75316420]
        %314 = vrot.lane.b32.xlu0 %v313, 1
        %v315 = vpop.permute.xlu0 %314
        %317 = vst [vmem:[#allocation1] ss:$2 sm:$0xff] %v233
        %v318 = vld.sshfl [vmem:[#allocation1] sm:$0xff pattern:$0x75316420]
        %v319 = vld.sshfl [vmem:[#allocation1 + $0x8] sm:$0xff pattern:$0x75316420]
        %320 = vrot.lane.b32.xlu0 %v318, 1
        %v321 = vpop.permute.xlu0 %320
        %322 = vrot.lane.b32.xlu0 %v319, 1
        %v323 = vpop.permute.xlu0 %322
        %vm324 = vcmask 7168
        %v325 = vsel %vm324, %v321, %v323
        %v328 = vsel %vm324, %v315, %v321
        %s329 = scalar_lea.vmem [#allocation5], 6
        %v330 = vld [vmem:[%s329] sm:$0x3]
        %v332 = vperm.slane %v330, 0
        %v333 = vperm.slane %v330, 1
        %v336 = vmul.f32 %v328, %v332
        %v337 = vmul.f32 %v325, %v333
        %s338 = scalar_lea.vmem [#allocation5], 8
        %v339 = vld [vmem:[%s338] sm:$0x3]
        %v341 = vperm.slane %v339, 0
        %v342 = vperm.slane %v339, 1
        %v343 = vrot.slane %v342, 4
        %vm344 = vcmask 1043456
        %v345 = vsel %vm344, %v341, %v343
        %v347 = vmul.f32 %v233, %v345
        %348 = vst [vmem:[#allocation1] ss:$2 sm:$0xff] %v233
        %v349 = vld.sshfl [vmem:[#allocation1] sm:$0xff pattern:$0x75316420]
        %v350 = vld.sshfl [vmem:[#allocation1 + $0x8] sm:$0xff pattern:$0x75316420]
        %351 = vrot.lane.b32.xlu0 %v349, 127
        %v352 = vpop.permute.xlu0 %351
        %353 = vrot.lane.b32.xlu0 %v350, 127
        %v354 = vpop.permute.xlu0 %353
        %vm355 = vcmask 1039360
        %v356 = vsel %vm355, %v352, %v354
        %359 = vst [vmem:[#allocation1] ss:$2 sm:$0xff] %v233
        %v360 = vld.sshfl [vmem:[#allocation1] sm:$0xff pattern:$0x75316420]
        %361 = vrot.lane.b32.xlu0 %v360, 127
        %v362 = vpop.permute.xlu0 %361
        %v364 = vsel %vm355, %v354, %v362
        %s365 = scalar_lea.vmem [#allocation5], 10
        %v366 = vld [vmem:[%s365] sm:$0x3]
        %v368 = vperm.slane %v366, 0
        %v369 = vperm.slane %v366, 1
        %v372 = vmul.f32 %v356, %v368
        %v373 = vmul.f32 %v364, %v369
        %374 = vst [vmem:[#allocation1] ss:$2 sm:$0xff] %v233
        %v375 = vld.sshfl [vmem:[#allocation1] sm:$0xff pattern:$0x75316420]
        %v376 = vld.sshfl [vmem:[#allocation1 + $0x8] sm:$0xff pattern:$0x75316420]
        %377 = vrot.lane.b32.xlu0 %v375, 113
        %v378 = vpop.permute.xlu0 %377
        %379 = vrot.lane.b32.xlu0 %v376, 113
        %v380 = vpop.permute.xlu0 %379
        %vm381 = vcmask 924672
        %v382 = vsel %vm381, %v378, %v380
        %385 = vst [vmem:[#allocation1] ss:$2 sm:$0xff] %v233
        %v386 = vld.sshfl [vmem:[#allocation1] sm:$0xff pattern:$0x75316420]
        %387 = vrot.lane.b32.xlu0 %v386, 113
        %v388 = vpop.permute.xlu0 %387
        %v390 = vsel %vm381, %v380, %v388
        %s391 = scalar_lea.vmem [#allocation5], 12
        %v392 = vld [vmem:[%s391] sm:$0x3]
        %v394 = vperm.slane %v392, 0
        %v395 = vperm.slane %v392, 1
        %v398 = vmul.f32 %v382, %v394
        %v399 = vmul.f32 %v390, %v395
        %400 = vst [vmem:[#allocation1] ss:$2 sm:$0xff] %v233
        %v401 = vld.sshfl [vmem:[#allocation1] sm:$0xff pattern:$0x75316420]
        %v402 = vld.sshfl [vmem:[#allocation1 + $0x8] sm:$0xff pattern:$0x75316420]
        %403 = vrot.lane.b32.xlu0 %v401, 112
        %v404 = vpop.permute.xlu0 %403
        %405 = vrot.lane.b32.xlu0 %v402, 112
        %v406 = vpop.permute.xlu0 %405
        %vm407 = vcmask 916480
        %v408 = vsel %vm407, %v404, %v406
        %411 = vst [vmem:[#allocation1] ss:$2 sm:$0xff] %v233
        %v412 = vld.sshfl [vmem:[#allocation1] sm:$0xff pattern:$0x75316420]
        %413 = vrot.lane.b32.xlu0 %v412, 112
        %v414 = vpop.permute.xlu0 %413
        %v416 = vsel %vm407, %v406, %v414
        %s417 = scalar_lea.vmem [#allocation5], 14
        %v418 = vld [vmem:[%s417] sm:$0x3]
        %v420 = vperm.slane %v418, 0
        %v421 = vperm.slane %v418, 1
        %v424 = vmul.f32 %v408, %v420
        %v425 = vmul.f32 %v416, %v421
        %426 = vst [vmem:[#allocation1] ss:$2 sm:$0xff] %v233
        %v427 = vld.sshfl [vmem:[#allocation1] sm:$0xff pattern:$0x75316420]
        %v428 = vld.sshfl [vmem:[#allocation1 + $0x8] sm:$0xff pattern:$0x75316420]
        %429 = vrot.lane.b32.xlu0 %v427, 111
        %v430 = vpop.permute.xlu0 %429
        %431 = vrot.lane.b32.xlu0 %v428, 111
        %v432 = vpop.permute.xlu0 %431
        %vm433 = vcmask 908288
        %v434 = vsel %vm433, %v430, %v432
        %437 = vst [vmem:[#allocation1] ss:$2 sm:$0xff] %v233
        %v438 = vld.sshfl [vmem:[#allocation1] sm:$0xff pattern:$0x75316420]
        %439 = vrot.lane.b32.xlu0 %v438, 111
        %v440 = vpop.permute.xlu0 %439
        %v442 = vsel %vm433, %v432, %v440
        %s443 = scalar_lea.vmem [#allocation5], 16
        %v444 = vld [vmem:[%s443] sm:$0x3]
        %v446 = vperm.slane %v444, 0
        %v447 = vperm.slane %v444, 1
        %v450 = vmul.f32 %v434, %v446
        %v451 = vmul.f32 %v442, %v447
        %v454 = vrot.slane %v284, 4
        %v455 = vrot.slane %v285, 4
        %v460 = vrot.slane %v336, 4
        %v461 = vrot.slane %v337, 4
        %465 = vst [vmem:[#allocation1] ss:$2 sm:$0xff] %v347
        %v466 = vld.sshfl [vmem:[#allocation1] sm:$0xff pattern:$0x75316420]
        %v467 = vld.sshfl [vmem:[#allocation1 + $0x8] sm:$0xff pattern:$0x75316420]
        %v472 = vrot.slane %v372, 4
        %v473 = vrot.slane %v373, 4
        %v478 = vrot.slane %v424, 4
        %v479 = vrot.slane %v425, 4
        %v482 = vsel %vm344, %v258, %v454
        %v483 = vsel %vm344, %v259, %v455
        %v484 = vsel %vm344, %v310, %v460
        %v485 = vsel %vm344, %v311, %v461
        %v486 = vsel %vm344, %v466, %v472
        %v487 = vsel %vm344, %v467, %v473
        %v488 = vsel %vm344, %v398, %v478
        %v489 = vsel %vm344, %v399, %v479
        %v490 = vld [vmem:[%s1] sm:$0xff]
        %v491 = vld [vmem:[%s2] sm:$0xff]
        %493 = vset.pattern.permute.xlu0 0
        %494 = vperm.xlu0 %493, %v491
        %v495 = vpop.permute.xlu0 %494
        %vm497 = vcmask 293888
        %v499 = vsel %vm497, %v490, 0
        %v502 = vsel %vm344, %v450, 0
        %v505 = vsel %vm344, %v451, 0
        %507 = vmatpush.msra.mxu0 0.0
        %508 = vmatpush.msra.mxu0 0.0
        %509 = vmatpush.msra.mxu0 0.0
        %510 = vmatpush.msra.mxu0 0.0
        %511 = vmatpush.msra.mxu0 0.0
        %512 = vmatpush.msra.mxu0 0.0
        %513 = vmatpush.msra.mxu0 0.0
        %514 = vmatpush.msra.mxu0 0.0
        %515 = vmatpush.msra.mxu0 0.0
        %516 = vmatpush.msra.mxu0 0.0
        %517 = vmatpush.msra.mxu0 0.0
        %518 = vmatpush.msra.mxu0 %v502
        %519 = vmatpush.msra.mxu0 %v488
        %520 = vmatpush.msra.mxu0 %v486
        %521 = vmatpush.msra.mxu0 %v484
        %522 = vmatpush.msra.mxu0 %v482
        %523 = vmatmul.f32.gmra.mxu0 %v499
        %v524 = vpop.f32.mrf.mxu0
        %v525 = vadd.f32 %v495, %v524
        %526 = vdwg.mxu0
        %527 = vmatpush.msra.mxu0 0.0
        %528 = vmatpush.msra.mxu0 0.0
        %529 = vmatpush.msra.mxu0 0.0
        %530 = vmatpush.msra.mxu0 0.0
        %531 = vmatpush.msra.mxu0 0.0
        %532 = vmatpush.msra.mxu0 0.0
        %533 = vmatpush.msra.mxu0 0.0
        %534 = vmatpush.msra.mxu0 0.0
        %535 = vmatpush.msra.mxu0 0.0
        %536 = vmatpush.msra.mxu0 0.0
        %537 = vmatpush.msra.mxu0 0.0
        %538 = vmatpush.msra.mxu0 %v505
        %539 = vmatpush.msra.mxu0 %v489
        %540 = vmatpush.msra.mxu0 %v487
        %541 = vmatpush.msra.mxu0 %v485
        %542 = vmatpush.msra.mxu0 %v483
        %543 = vmatmul.f32.gmra.mxu0 %v499
        %v544 = vpop.f32.mrf.mxu0
        %v545 = vadd.f32 %v495, %v544
        %546 = vdwg.mxu0
        %v547 = vmax.f32 %v525, 0.0
        %v548 = vmax.f32 %v545, 0.0
        %549 = vst [vmem:[%s232] sm:$0xff] %v547
        %550 = vst [vmem:[%s232 + $0x8] sm:$0xff] %v548
        %s551 = sand.u32 %s119, 1
        %s552 = scalar_lea.sflag [#allocation4], %s551
        %s553 = sand.u32 %s119, 1
        %s554 = smul.addr %s553, 16
        %s555 = scalar_lea.vmem [#allocation7], %s554
        // Predicated region
        $region45: #{tpu_custom_call.1} parent=35 // pred_check
          %p556 = pneg %p129
        $region46: #{tpu_custom_call.1} parent=35 // pred_check_branch
          %558 = sbr.rel (%p556) target = $region48
        $region47: #{tpu_custom_call.1} parent=35 // pred_region
          %560 = vsyncadd %s552, 0
          %s561 = smul.addr %s22, 2
          %s562 = smul.addr %s561, 8
          %s563 = scalar_lea.hbm %s4, %s562
          %s565 = sshll.u32 %s555, 4
          %s566 = int_to_ptr.vmem [resolvable:$true] %s565
          %s567 = sshll.u32 %s563, 4
          %s568 = int_to_ptr.hbm [resolvable:$true] %s567
          %570 = dma.vmem_to_hbm [thread:$0]  %s566, 256, %s568, %s552
        $region48: #{tpu_custom_call.1} parent=35 // pred_fallthru
          _
      $region36: #{tpu_custom_call.1} parent=5 // pred_fallthru
        _
      %p571 = scmp.le.s32.totalorder 2, %s17
      // Predicated region
      $region49: #{tpu_custom_call.1} parent=5 // pred_check
        %p572 = pneg %p571
      $region50: #{tpu_custom_call.1} parent=5 // pred_check_branch
        %574 = sbr.rel (%p572) target = $region52
      $region51: #{tpu_custom_call.1} parent=5 // pred_region
        %s575 = ssub.s32 %s17, 2
        // Predicated region
        $region53: #{tpu_custom_call.1} parent=51 // pred_check
          %p576 = pneg %p135
        $region54: #{tpu_custom_call.1} parent=51 // pred_check_branch
          %578 = sbr.rel (%p576) target = $region56
        $region55: #{tpu_custom_call.1} parent=51 // pred_region
          %s579 = sand.u32 %s120, 1
          %s580 = scalar_lea.sflag [#allocation4], %s579
          %s581 = sand.u32 %s120, 1
          %s582 = smul.addr %s581, 16
          %s583 = scalar_lea.vmem [#allocation7], %s582
          %585 = dma.done %s580, 256
        $region56: #{tpu_custom_call.1} parent=51 // pred_fallthru
          _
      $region52: #{tpu_custom_call.1} parent=5 // pred_fallthru
        _
    $region6: #{tpu_custom_call.1} parent=1 // loop_footer
      %s21 = sadd.s32 1, %s17
    $region7: #{tpu_custom_call.1} parent=1 // loop_footer_branch
      %16 = sbr.rel target = $region3
    $region8: #{tpu_custom_call.1} parent=1 // loop_exit
      _
    %586 = vsyncpa [#allocation3], 1
    %s587 = scalar_lea.sflag [#allocation3], 1
    %588 = vsyncpa %s587, 1
    %589 = vsyncpa [#allocation6], 1
    %590 = vsyncpa [#allocation4], 1
    %s591 = scalar_lea.sflag [#allocation4], 1
    %592 = vsyncpa %s591, 1

</llo_original>
